<compile_context>
chip_gen: v5e
topology: v5e:2x2
jax: 0.10.0
libtpu: 0.0.40
codegen_flags: <defaults>
</compile_context>

<pallas_src>
import functools

import jax
import jax.numpy as jnp
from jax.experimental import pallas as pl
from jax.experimental.pallas import tpu as pltpu

# ------------- configuration (mirrors Convolutional.__init__ args) -----------
BATCH_NORM = True          # batch_normalize
FILTERS_IN = 4
FILTERS_OUT = 8
KSIZE = 3
STRIDE = 1
PAD = True
ACTIVATION = "leaky"       # 'leaky' or 'mish'
LEAKY_SLOPE = 0.01         # nn.LeakyReLU() default
BN_EPS = 1e-5

SUBLANE = 8
LANE = 128


def _round_up(a, b):
    return (a + b - 1) // b * b


def _conv_bn_act_kernel(w_ref, x_ref, b_ref, o_ref, *, ksize, wp,
                        activation, slope):
    """Fused conv(+BN)+activation for one image; im2col never leaves VMEM.

    w_ref: (K*K, Cout, Cin_p)  per-tap weights, BN scale folded, Cin padded to 8
    x_ref: (1, Cin_p, Lp)      padded image, lane axis = flattened hp*Wp + wp
    b_ref: (Cout, 1)           folded BN bias (or conv bias)
    o_ref: (1, Cout, Lq)       lane-dense output, lane q = ho*Wp + wo
    """
    lq = o_ref.shape[-1]
    cout = o_ref.shape[1]
    acc = jnp.zeros((cout, lq), jnp.float32)
    # Each tap is a static lane-shifted slice of the resident padded image.
    for ky in range(ksize):
        for kx in range(ksize):
            t = ky * ksize + kx
            s = ky * wp + kx
            acc = acc + jnp.dot(w_ref[t], x_ref[0, :, s:s + lq],
                                preferred_element_type=jnp.float32)
    y = acc + b_ref[...]                       # (Cout,1) broadcast over lanes
    if activation == "leaky":
        y = jnp.maximum(y, slope * y)          # vmul + vmax, no cmp/select
    elif activation == "mish":
        # TODO(synk): mish branch is not exercised by the self-test below.
        y = y * jnp.tanh(jax.nn.softplus(y))
    o_ref[0] = y.astype(o_ref.dtype)


def convolutional_forward(x_nchw, w_oihw, bn_gamma=None, bn_beta=None,
                          bn_mean=None, bn_var=None, conv_bias=None):
    """Forward pass matching Convolutional.forward (BatchNorm in eval mode)."""
    # TODO(synk): the padded-flat lane-shift trick assumes stride == 1 (the
    #             configured value); stride > 1 would need a strided lane gather.
    assert STRIDE == 1
    N, Cin, H, W = x_nchw.shape
    Cout = w_oihw.shape[0]
    K = KSIZE
    padding = (K - 1) // 2 if PAD else 0
    Hp, Wp = H + 2 * padding, W + 2 * padding
    Ho = Hp - K + 1
    Wo = Wp - K + 1

    # Lane extents: output lanes rounded to 128 for unmasked stores; input
    # lanes must additionally cover the largest tap shift (K-1)*Wp + (K-1).
    lq = _round_up(Ho * Wp, LANE)
    s_max = (K - 1) * Wp + (K - 1)
    lp = _round_up(lq + s_max, LANE)
    cin_p = _round_up(Cin, SUBLANE)            # sublane-aligned contraction

    # ---- wrapper glue: one cheap pad/reshape pass over x (no HBM im2col) ----
    x_pad = jnp.pad(x_nchw,
                    ((0, 0), (0, 0), (padding, padding), (padding, padding)))
    x_flat = x_pad.reshape(N, Cin, Hp * Wp).astype(jnp.float32)
    x_flat = jnp.pad(x_flat, ((0, 0), (0, cin_p - Cin), (0, lp - Hp * Wp)))

    # per-tap weights (K*K, Cout, Cin_p), BN scale folded in
    w_taps = jnp.transpose(w_oihw, (2, 3, 0, 1)).reshape(K * K, Cout, Cin)
    w_taps = w_taps.astype(jnp.float32)
    if BATCH_NORM:
        scale = bn_gamma / jnp.sqrt(bn_var + BN_EPS)
        bias = bn_beta - bn_mean * scale
        w_taps = w_taps * scale[None, :, None]
    else:
        bias = conv_bias if conv_bias is not None else jnp.zeros((Cout,),
                                                                 jnp.float32)
    w_taps = jnp.pad(w_taps, ((0, 0), (0, 0), (0, cin_p - Cin)))
    bias = bias.reshape(Cout, 1).astype(jnp.float32)

    kernel = functools.partial(_conv_bn_act_kernel, ksize=K, wp=Wp,
                               activation=ACTIVATION, slope=LEAKY_SLOPE)

    out_flat = pl.pallas_call(
        kernel,
        out_shape=jax.ShapeDtypeStruct((N, Cout, lq), jnp.float32),
        grid_spec=pltpu.PrefetchScalarGridSpec(
            num_scalar_prefetch=0,
            grid=(N,),                                        # >=2 steps: both
            in_specs=[                                        #  v7x TCs busy
                pl.BlockSpec((K * K, Cout, cin_p), lambda n: (0, 0, 0)),
                pl.BlockSpec((1, cin_p, lp), lambda n: (n, 0, 0)),
                pl.BlockSpec((Cout, 1), lambda n: (0, 0)),
            ],
            out_specs=pl.BlockSpec((1, Cout, lq), lambda n: (n, 0, 0)),
        ),
        compiler_params=pltpu.CompilerParams(
            dimension_semantics=("parallel",)),
    )(w_taps, x_flat, bias)

    # (N, Cout, q = ho*Wp + wo) -> NCHW: drop per-row padding columns and the
    # rounded-up lane tail (those lanes hold garbage and must stay sliced off).
    out = out_flat[:, :, :Ho * Wp].reshape(N, Cout, Ho, Wp)[:, :, :, :Wo]
    return out


def _reference(x_nchw, w_oihw, bn_gamma, bn_beta, bn_mean, bn_var):
    """Pure-JAX reference (same semantics) for the correctness check."""
    padding = (KSIZE - 1) // 2 if PAD else 0
    y = jax.lax.conv_general_dilated(
        x_nchw, w_oihw, window_strides=(STRIDE, STRIDE),
        padding=((padding, padding), (padding, padding)),
        dimension_numbers=("NCHW", "OIHW", "NCHW"))
    if BATCH_NORM:
        scale = (bn_gamma / jnp.sqrt(bn_var + BN_EPS)).reshape(1, -1, 1, 1)
        bias = (bn_beta.reshape(1, -1, 1, 1)
                - bn_mean.reshape(1, -1, 1, 1) * scale)
        y = y * scale + bias
    if ACTIVATION == "leaky":
        y = jnp.where(y > 0, y, LEAKY_SLOPE * y)
    elif ACTIVATION == "mish":
        y = y * jnp.tanh(jax.nn.softplus(y))
    return y


if __name__ == "__main__":
    key = jax.random.PRNGKey(0)
    k_x, k_w, k_g, k_b, k_m, k_v = jax.random.split(key, 6)

    N, Cin, H, W = 2, FILTERS_IN, 16, 16
    x = jax.random.normal(k_x, (N, Cin, H, W), jnp.float32)

    # deterministic synthetic parameters (shapes from nn.Conv2d / nn.BatchNorm2d)
    w = jax.random.normal(k_w, (FILTERS_OUT, Cin, KSIZE, KSIZE), jnp.float32) * 0.1
    # TODO(synk): BatchNorm is applied in eval mode (running stats); training-mode
    #             batch-statistics BN is not reproduced here.
    gamma = 1.0 + 0.1 * jax.random.normal(k_g, (FILTERS_OUT,), jnp.float32)
    beta = 0.1 * jax.random.normal(k_b, (FILTERS_OUT,), jnp.float32)
    run_mean = 0.1 * jax.random.normal(k_m, (FILTERS_OUT,), jnp.float32)
    run_var = jnp.abs(1.0 + 0.1 * jax.random.normal(k_v, (FILTERS_OUT,),
                                                    jnp.float32))

    out = convolutional_forward(x, w, gamma, beta, run_mean, run_var)
    out = jax.block_until_ready(out)

    ref = _reference(x, w, gamma, beta, run_mean, run_var)
    assert out.shape == (N, FILTERS_OUT, H, W)
    assert jnp.allclose(out, ref, rtol=1e-4, atol=1e-4), "mismatch vs reference"

    print("KERNEL_OK")
</pallas_src>

<mosaic_0001>
module attributes {stable_mosaic.version = 11 : i64} {
  func.func @_conv_bn_act_kernel(%arg0: i32, %arg1: memref<9x8x8xf32, #tpu.memory_space<vmem>>, %arg2: memref<1x8x512xf32, #tpu.memory_space<vmem>>, %arg3: memref<8x1xf32, #tpu.memory_space<vmem>>, %arg4: memref<1x8x384xf32, #tpu.memory_space<vmem>>) attributes {dimension_semantics = [#tpu.dimension_semantics<parallel>], iteration_bounds = array<i64: 2>, scalar_prefetch = 0 : i64, scratch_operands = 0 : i64, tpu.core_type = #tpu.core_type<tc>, window_params = [{pipeline_mode = #tpu.pipeline_mode<synchronous>, transform_indices = @transform_0, window_bounds = array<i64: 9, 8, 8>}, {transform_indices = @transform_1, window_bounds = array<i64: 1, 8, 512>}, {pipeline_mode = #tpu.pipeline_mode<synchronous>, transform_indices = @transform_2, window_bounds = array<i64: 8, 1>}, {transform_indices = @transform_3, window_bounds = array<i64: 1, 8, 384>}]} {
    %cst = arith.constant 0.000000e+00 : f32
    %0 = vector.broadcast %cst : f32 to vector<8x384xf32>
    %c0 = arith.constant 0 : index
    %c0_0 = arith.constant 0 : index
    %c0_1 = arith.constant 0 : index
    %1 = vector.load %arg1[%c0, %c0_0, %c0_1] : memref<9x8x8xf32, #tpu.memory_space<vmem>>, vector<1x8x8xf32>
    %2 = vector.shape_cast %1 : vector<1x8x8xf32> to vector<8x8xf32>
    %c0_2 = arith.constant 0 : index
    %c0_3 = arith.constant 0 : index
    %c0_4 = arith.constant 0 : index
    %3 = vector.load %arg2[%c0_2, %c0_3, %c0_4] : memref<1x8x512xf32, #tpu.memory_space<vmem>>, vector<1x8x384xf32>
    %4 = vector.shape_cast %3 : vector<1x8x384xf32> to vector<8x384xf32>
    %cst_5 = arith.constant dense<0.000000e+00> : vector<8x384xf32>
    %5 = tpu.matmul %2, %4, %cst_5 {dimension_numbers = #tpu.dot_dimension_numbers<[1], [0], [0], [1], [0, 0, 1, 1], [], []>} : vector<8x8xf32>, vector<8x384xf32>, vector<8x384xf32> -> vector<8x384xf32>
    %6 = arith.addf %0, %5 : vector<8x384xf32>
    %c1 = arith.constant 1 : index
    %c0_6 = arith.constant 0 : index
    %c0_7 = arith.constant 0 : index
    %7 = vector.load %arg1[%c1, %c0_6, %c0_7] : memref<9x8x8xf32, #tpu.memory_space<vmem>>, vector<1x8x8xf32>
    %8 = vector.shape_cast %7 : vector<1x8x8xf32> to vector<8x8xf32>
    %c0_8 = arith.constant 0 : index
    %c0_9 = arith.constant 0 : index
    %c1_10 = arith.constant 1 : index
    %9 = vector.load %arg2[%c0_8, %c0_9, %c1_10] : memref<1x8x512xf32, #tpu.memory_space<vmem>>, vector<1x8x384xf32>
    %10 = vector.shape_cast %9 : vector<1x8x384xf32> to vector<8x384xf32>
    %cst_11 = arith.constant dense<0.000000e+00> : vector<8x384xf32>
    %11 = tpu.matmul %8, %10, %cst_11 {dimension_numbers = #tpu.dot_dimension_numbers<[1], [0], [0], [1], [0, 0, 1, 1], [], []>} : vector<8x8xf32>, vector<8x384xf32>, vector<8x384xf32> -> vector<8x384xf32>
    %12 = arith.addf %6, %11 : vector<8x384xf32>
    %c2 = arith.constant 2 : index
    %c0_12 = arith.constant 0 : index
    %c0_13 = arith.constant 0 : index
    %13 = vector.load %arg1[%c2, %c0_12, %c0_13] : memref<9x8x8xf32, #tpu.memory_space<vmem>>, vector<1x8x8xf32>
    %14 = vector.shape_cast %13 : vector<1x8x8xf32> to vector<8x8xf32>
    %c0_14 = arith.constant 0 : index
    %c0_15 = arith.constant 0 : index
    %c2_16 = arith.constant 2 : index
    %15 = vector.load %arg2[%c0_14, %c0_15, %c2_16] : memref<1x8x512xf32, #tpu.memory_space<vmem>>, vector<1x8x384xf32>
    %16 = vector.shape_cast %15 : vector<1x8x384xf32> to vector<8x384xf32>
    %cst_17 = arith.constant dense<0.000000e+00> : vector<8x384xf32>
    %17 = tpu.matmul %14, %16, %cst_17 {dimension_numbers = #tpu.dot_dimension_numbers<[1], [0], [0], [1], [0, 0, 1, 1], [], []>} : vector<8x8xf32>, vector<8x384xf32>, vector<8x384xf32> -> vector<8x384xf32>
    %18 = arith.addf %12, %17 : vector<8x384xf32>
    %c3 = arith.constant 3 : index
    %c0_18 = arith.constant 0 : index
    %c0_19 = arith.constant 0 : index
    %19 = vector.load %arg1[%c3, %c0_18, %c0_19] : memref<9x8x8xf32, #tpu.memory_space<vmem>>, vector<1x8x8xf32>
    %20 = vector.shape_cast %19 : vector<1x8x8xf32> to vector<8x8xf32>
    %c0_20 = arith.constant 0 : index
    %c0_21 = arith.constant 0 : index
    %c18 = arith.constant 18 : index
    %21 = vector.load %arg2[%c0_20, %c0_21, %c18] : memref<1x8x512xf32, #tpu.memory_space<vmem>>, vector<1x8x384xf32>
    %22 = vector.shape_cast %21 : vector<1x8x384xf32> to vector<8x384xf32>
    %cst_22 = arith.constant dense<0.000000e+00> : vector<8x384xf32>
    %23 = tpu.matmul %20, %22, %cst_22 {dimension_numbers = #tpu.dot_dimension_numbers<[1], [0], [0], [1], [0, 0, 1, 1], [], []>} : vector<8x8xf32>, vector<8x384xf32>, vector<8x384xf32> -> vector<8x384xf32>
    %24 = arith.addf %18, %23 : vector<8x384xf32>
    %c4 = arith.constant 4 : index
    %c0_23 = arith.constant 0 : index
    %c0_24 = arith.constant 0 : index
    %25 = vector.load %arg1[%c4, %c0_23, %c0_24] : memref<9x8x8xf32, #tpu.memory_space<vmem>>, vector<1x8x8xf32>
    %26 = vector.shape_cast %25 : vector<1x8x8xf32> to vector<8x8xf32>
    %c0_25 = arith.constant 0 : index
    %c0_26 = arith.constant 0 : index
    %c19 = arith.constant 19 : index
    %27 = vector.load %arg2[%c0_25, %c0_26, %c19] : memref<1x8x512xf32, #tpu.memory_space<vmem>>, vector<1x8x384xf32>
    %28 = vector.shape_cast %27 : vector<1x8x384xf32> to vector<8x384xf32>
    %cst_27 = arith.constant dense<0.000000e+00> : vector<8x384xf32>
    %29 = tpu.matmul %26, %28, %cst_27 {dimension_numbers = #tpu.dot_dimension_numbers<[1], [0], [0], [1], [0, 0, 1, 1], [], []>} : vector<8x8xf32>, vector<8x384xf32>, vector<8x384xf32> -> vector<8x384xf32>
    %30 = arith.addf %24, %29 : vector<8x384xf32>
    %c5 = arith.constant 5 : index
    %c0_28 = arith.constant 0 : index
    %c0_29 = arith.constant 0 : index
    %31 = vector.load %arg1[%c5, %c0_28, %c0_29] : memref<9x8x8xf32, #tpu.memory_space<vmem>>, vector<1x8x8xf32>
    %32 = vector.shape_cast %31 : vector<1x8x8xf32> to vector<8x8xf32>
    %c0_30 = arith.constant 0 : index
    %c0_31 = arith.constant 0 : index
    %c20 = arith.constant 20 : index
    %33 = vector.load %arg2[%c0_30, %c0_31, %c20] : memref<1x8x512xf32, #tpu.memory_space<vmem>>, vector<1x8x384xf32>
    %34 = vector.shape_cast %33 : vector<1x8x384xf32> to vector<8x384xf32>
    %cst_32 = arith.constant dense<0.000000e+00> : vector<8x384xf32>
    %35 = tpu.matmul %32, %34, %cst_32 {dimension_numbers = #tpu.dot_dimension_numbers<[1], [0], [0], [1], [0, 0, 1, 1], [], []>} : vector<8x8xf32>, vector<8x384xf32>, vector<8x384xf32> -> vector<8x384xf32>
    %36 = arith.addf %30, %35 : vector<8x384xf32>
    %c6 = arith.constant 6 : index
    %c0_33 = arith.constant 0 : index
    %c0_34 = arith.constant 0 : index
    %37 = vector.load %arg1[%c6, %c0_33, %c0_34] : memref<9x8x8xf32, #tpu.memory_space<vmem>>, vector<1x8x8xf32>
    %38 = vector.shape_cast %37 : vector<1x8x8xf32> to vector<8x8xf32>
    %c0_35 = arith.constant 0 : index
    %c0_36 = arith.constant 0 : index
    %c36 = arith.constant 36 : index
    %39 = vector.load %arg2[%c0_35, %c0_36, %c36] : memref<1x8x512xf32, #tpu.memory_space<vmem>>, vector<1x8x384xf32>
    %40 = vector.shape_cast %39 : vector<1x8x384xf32> to vector<8x384xf32>
    %cst_37 = arith.constant dense<0.000000e+00> : vector<8x384xf32>
    %41 = tpu.matmul %38, %40, %cst_37 {dimension_numbers = #tpu.dot_dimension_numbers<[1], [0], [0], [1], [0, 0, 1, 1], [], []>} : vector<8x8xf32>, vector<8x384xf32>, vector<8x384xf32> -> vector<8x384xf32>
    %42 = arith.addf %36, %41 : vector<8x384xf32>
    %c7 = arith.constant 7 : index
    %c0_38 = arith.constant 0 : index
    %c0_39 = arith.constant 0 : index
    %43 = vector.load %arg1[%c7, %c0_38, %c0_39] : memref<9x8x8xf32, #tpu.memory_space<vmem>>, vector<1x8x8xf32>
    %44 = vector.shape_cast %43 : vector<1x8x8xf32> to vector<8x8xf32>
    %c0_40 = arith.constant 0 : index
    %c0_41 = arith.constant 0 : index
    %c37 = arith.constant 37 : index
    %45 = vector.load %arg2[%c0_40, %c0_41, %c37] : memref<1x8x512xf32, #tpu.memory_space<vmem>>, vector<1x8x384xf32>
    %46 = vector.shape_cast %45 : vector<1x8x384xf32> to vector<8x384xf32>
    %cst_42 = arith.constant dense<0.000000e+00> : vector<8x384xf32>
    %47 = tpu.matmul %44, %46, %cst_42 {dimension_numbers = #tpu.dot_dimension_numbers<[1], [0], [0], [1], [0, 0, 1, 1], [], []>} : vector<8x8xf32>, vector<8x384xf32>, vector<8x384xf32> -> vector<8x384xf32>
    %48 = arith.addf %42, %47 : vector<8x384xf32>
    %c8 = arith.constant 8 : index
    %c0_43 = arith.constant 0 : index
    %c0_44 = arith.constant 0 : index
    %49 = vector.load %arg1[%c8, %c0_43, %c0_44] : memref<9x8x8xf32, #tpu.memory_space<vmem>>, vector<1x8x8xf32>
    %50 = vector.shape_cast %49 : vector<1x8x8xf32> to vector<8x8xf32>
    %c0_45 = arith.constant 0 : index
    %c0_46 = arith.constant 0 : index
    %c38 = arith.constant 38 : index
    %51 = vector.load %arg2[%c0_45, %c0_46, %c38] : memref<1x8x512xf32, #tpu.memory_space<vmem>>, vector<1x8x384xf32>
    %52 = vector.shape_cast %51 : vector<1x8x384xf32> to vector<8x384xf32>
    %cst_47 = arith.constant dense<0.000000e+00> : vector<8x384xf32>
    %53 = tpu.matmul %50, %52, %cst_47 {dimension_numbers = #tpu.dot_dimension_numbers<[1], [0], [0], [1], [0, 0, 1, 1], [], []>} : vector<8x8xf32>, vector<8x384xf32>, vector<8x384xf32> -> vector<8x384xf32>
    %54 = arith.addf %48, %53 : vector<8x384xf32>
    %c0_48 = arith.constant 0 : index
    %c0_49 = arith.constant 0 : index
    %55 = vector.load %arg3[%c0_48, %c0_49] : memref<8x1xf32, #tpu.memory_space<vmem>>, vector<8x1xf32>
    %56 = vector.broadcast %55 : vector<8x1xf32> to vector<8x384xf32>
    %57 = arith.addf %54, %56 : vector<8x384xf32>
    %cst_50 = arith.constant 0.00999999977 : f32
    %58 = vector.broadcast %cst_50 : f32 to vector<8x384xf32>
    %59 = arith.mulf %58, %57 : vector<8x384xf32>
    %60 = arith.maximumf %57, %59 : vector<8x384xf32>
    %c0_51 = arith.constant 0 : index
    %c0_52 = arith.constant 0 : index
    %c0_53 = arith.constant 0 : index
    %61 = vector.load %arg4[%c0_51, %c0_52, %c0_53] : memref<1x8x384xf32, #tpu.memory_space<vmem>>, vector<1x8x384xf32>
    %62 = vector.shape_cast %61 : vector<1x8x384xf32> to vector<8x384xf32>
    %63 = vector.shape_cast %60 : vector<8x384xf32> to vector<1x8x384xf32>
    tpu.vector_store %arg4[%c0_51, %c0_52, %c0_53], %63 {strides = array<i32>} : memref<1x8x384xf32, #tpu.memory_space<vmem>>, vector<1x8x384xf32>,
    return
  }
  func.func @transform_0(%arg0: i32) -> (i32, i32, i32) {
    %c0_i32 = arith.constant 0 : i32
    %c0_i32_0 = arith.constant 0 : i32
    %c0_i32_1 = arith.constant 0 : i32
    %c0_i32_2 = arith.constant 0 : i32
    return %c0_i32, %c0_i32_0, %c0_i32_1 : i32, i32, i32
  }
  func.func @transform_1(%arg0: i32) -> (i32, i32, i32) {
    %c0_i32 = arith.constant 0 : i32
    %c0_i32_0 = arith.constant 0 : i32
    %c0_i32_1 = arith.constant 0 : i32
    return %arg0, %c0_i32, %c0_i32_0 : i32, i32, i32
  }
  func.func @transform_2(%arg0: i32) -> (i32, i32) {
    %c0_i32 = arith.constant 0 : i32
    %c0_i32_0 = arith.constant 0 : i32
    %c0_i32_1 = arith.constant 0 : i32
    return %c0_i32, %c0_i32_0 : i32, i32
  }
  func.func @transform_3(%arg0: i32) -> (i32, i32, i32) {
    %c0_i32 = arith.constant 0 : i32
    %c0_i32_0 = arith.constant 0 : i32
    %c0_i32_1 = arith.constant 0 : i32
    return %arg0, %c0_i32, %c0_i32_0 : i32, i32, i32
  }
}

</mosaic_0001>

<llo_original>
// kernel: tpu_custom_call.1
$region0: #{tpu_custom_call.1}
  #allocation0 [shape = 'u32[]', space=smem, size = 0x4, offset = 0x4, fixed_abs, tag = 'smem constant byte address 0x4 - core index']
  #allocation1 [shape = 'u32[72,128]{1,0:T(1,128)}', space=vmem, size = 0x9000, scoped, tag = 'internal scratch']
  %s0 = inlined_call_operand.vmem [shape: f32[9,8,8], index: 0, kind: input, shape index: {}]
  %s1 = inlined_call_operand.vmem [shape: f32[2,8,512], index: 1, kind: input, shape index: {}]
  %s2 = inlined_call_operand.vmem [shape: f32[8,1], index: 2, kind: input, shape index: {}]
  %s3 = inlined_call_operand.hbm [shape: f32[2,8,384], index: 3, kind: output, shape index: {}]
  %s4 = sld [smem:[#allocation0]]
  $region45: #{tpu_custom_call.1} parent=0
    _
  %s6 = ssub.s32 1, %s4
  %s7 = scalar_select 0, %s6, %s4
  $region1: #{tpu_custom_call.1} parent=0
    #allocation2 [shape = 'u8[24576]{0}', space=vmem, size = 0x6000, scoped, tag = 'output window, operand 0']
    #allocation3 [shape = 's32[2]{0}', space=sflag, size = 0x8, scoped, tag = 'scoped memory for tpu_custom_call.1']
    %8 = vsyncpa [#allocation3], 0
    %s9 = scalar_lea.sflag [#allocation3], 1
    %10 = vsyncpa %s9, 0
    loop: start=0, step=1, limit=4
    $region2: #{tpu_custom_call.1} parent=1 // loop_pre_header
      _
    $region3: #{tpu_custom_call.1} parent=1 // loop_header
      %s12 = sphi 0, %s16
      %p13 = scmp.ge.s32.totalorder %s12, 4
      %s20 = sphi 0, %s20
      %s22 = sphi 0, %s20
      %s23 = sphi 0, %s22
      %s37 = sphi 0, %s23
      %s43 = sphi 0, %s45
      %s46 = sphi 0, %s43
      %s47 = sphi 0, %s46
      %s63 = sphi 0, %s47
      %s67 = sphi 0, %s67
      %s69 = sphi 0, %s67
      %s70 = sphi 0, %s69
      %s84 = sphi 0, %s70
      %s90 = sphi 0, %s92
      %s93 = sphi 0, %s90
      %s94 = sphi 0, %s93
      %s110 = sphi 0, %s94
    $region4: #{tpu_custom_call.1} parent=1 // loop_header_branch
      %15 = sbr.rel (%p13) target = $region8
    $region5: #{tpu_custom_call.1} parent=1 // loop_body
      %s17 = ssub.s32 %s12, 1
      %s18 = ssub.s32 %s12, 2
      %s19 = sadd.s32 %s12, 1
      %s21 = sadd.s32 %s20, 1
      %p24 = scmp.eq.s32.totalorder %s12, 1
      %p25 = scmp.ne.s32.totalorder %s20, %s22
      %p26 = scmp.eq.s32.totalorder %s12, 0
      %p27 = por %p25, %p26
      %p28 = scmp.ne.s32.totalorder %s20, %s22
      %p29 = scmp.eq.s32.totalorder %s17, 1
      %p30 = por %p28, %p29
      %p31 = scmp.ne.s32.totalorder %s22, %s23
      %p32 = scmp.eq.s32.totalorder %s17, 0
      %p33 = por %p31, %p32
      %p34 = scmp.ne.s32.totalorder %s22, %s23
      %p35 = scmp.eq.s32.totalorder %s18, 1
      %p36 = por %p34, %p35
      %p38 = scmp.ne.s32.totalorder %s23, %s37
      %p39 = scmp.eq.s32.totalorder %s18, 0
      %p40 = por %p38, %p39
      %s41 = ssub.s32 %s12, %s19
      %p42 = scmp.eq.s32.totalorder %s41, 0
      %s44 = sadd.s32 %s43, 1
      %s45 = scalar_select %p42, %s43, %s44
      %p48 = pneg %p42
      %p49 = scmp.eq.s32.totalorder %s12, 1
      %p50 = por %p48, %p49
      %p51 = scmp.ne.s32.totalorder %s43, %s46
      %p52 = scmp.eq.s32.totalorder %s12, 0
      %p53 = por %p51, %p52
      %p54 = scmp.ne.s32.totalorder %s43, %s46
      %p55 = scmp.eq.s32.totalorder %s17, 1
      %p56 = por %p54, %p55
      %p57 = scmp.ne.s32.totalorder %s46, %s47
      %p58 = scmp.eq.s32.totalorder %s17, 0
      %p59 = por %p57, %p58
      %p60 = scmp.ne.s32.totalorder %s46, %s47
      %p61 = scmp.eq.s32.totalorder %s18, 1
      %p62 = por %p60, %p61
      %p64 = scmp.ne.s32.totalorder %s47, %s63
      %p65 = scmp.eq.s32.totalorder %s18, 0
      %p66 = por %p64, %p65
      %s68 = sadd.s32 %s67, 1
      %p71 = scmp.eq.s32.totalorder %s12, 1
      %p72 = scmp.ne.s32.totalorder %s67, %s69
      %p73 = scmp.eq.s32.totalorder %s12, 0
      %p74 = por %p72, %p73
      %p75 = scmp.ne.s32.totalorder %s67, %s69
      %p76 = scmp.eq.s32.totalorder %s17, 1
      %p77 = por %p75, %p76
      %p78 = scmp.ne.s32.totalorder %s69, %s70
      %p79 = scmp.eq.s32.totalorder %s17, 0
      %p80 = por %p78, %p79
      %p81 = scmp.ne.s32.totalorder %s69, %s70
      %p82 = scmp.eq.s32.totalorder %s18, 1
      %p83 = por %p81, %p82
      %p85 = scmp.ne.s32.totalorder %s70, %s84
      %p86 = scmp.eq.s32.totalorder %s18, 0
      %p87 = por %p85, %p86
      %s88 = ssub.s32 %s12, %s19
      %p89 = scmp.eq.s32.totalorder %s88, 0
      %s91 = sadd.s32 %s90, 1
      %s92 = scalar_select %p89, %s90, %s91
      %p95 = pneg %p89
      %p96 = scmp.eq.s32.totalorder %s12, 1
      %p97 = por %p95, %p96
      %p98 = scmp.ne.s32.totalorder %s90, %s93
      %p99 = scmp.eq.s32.totalorder %s12, 0
      %p100 = por %p98, %p99
      %p101 = scmp.ne.s32.totalorder %s90, %s93
      %p102 = scmp.eq.s32.totalorder %s17, 1
      %p103 = por %p101, %p102
      %p104 = scmp.ne.s32.totalorder %s93, %s94
      %p105 = scmp.eq.s32.totalorder %s17, 0
      %p106 = por %p104, %p105
      %p107 = scmp.ne.s32.totalorder %s93, %s94
      %p108 = scmp.eq.s32.totalorder %s18, 1
      %p109 = por %p107, %p108
      %p111 = scmp.ne.s32.totalorder %s94, %s110
      %p112 = scmp.eq.s32.totalorder %s18, 0
      %p113 = por %p111, %p112
      %p114 = scmp.le.s32.totalorder 1, %s12
      %p115 = scmp.lt.s32.totalorder %s12, 3
      %p116 = pnand %p114, %p115
      %p117 = pneg %p116
      // Predicated region
      $region9: #{tpu_custom_call.1} parent=5 // pred_check
        _
      $region10: #{tpu_custom_call.1} parent=5 // pred_check_branch
        %119 = sbr.rel (%p116) target = $region12
      $region11: #{tpu_custom_call.1} parent=5 // pred_region
        %s120 = ssub.s32 %s12, 1
        // Predicated region
        $region13: #{tpu_custom_call.1} parent=11 // pred_check
          %p121 = pneg %p33
        $region14: #{tpu_custom_call.1} parent=11 // pred_check_branch
          %123 = sbr.rel (%p121) target = $region16
        $region15: #{tpu_custom_call.1} parent=11 // pred_region
          _
        $region16: #{tpu_custom_call.1} parent=11 // pred_fallthru
          _
        // Predicated region
        $region17: #{tpu_custom_call.1} parent=11 // pred_check
          %p124 = pneg %p80
        $region18: #{tpu_custom_call.1} parent=11 // pred_check_branch
          %126 = sbr.rel (%p124) target = $region20
        $region19: #{tpu_custom_call.1} parent=11 // pred_region
          _
        $region20: #{tpu_custom_call.1} parent=11 // pred_fallthru
          _
      $region12: #{tpu_custom_call.1} parent=5 // pred_fallthru
        _
      %p127 = scmp.lt.s32.totalorder %s12, 2
      // Predicated region
      $region21: #{tpu_custom_call.1} parent=5 // pred_check
        %p128 = pneg %p127
      $region22: #{tpu_custom_call.1} parent=5 // pred_check_branch
        %130 = sbr.rel (%p128) target = $region24
      $region23: #{tpu_custom_call.1} parent=5 // pred_region
        // Predicated region
        $region25: #{tpu_custom_call.1} parent=23 // pred_check
          %p131 = pneg %p53
        $region26: #{tpu_custom_call.1} parent=23 // pred_check_branch
          %133 = sbr.rel (%p131) target = $region28
        $region27: #{tpu_custom_call.1} parent=23 // pred_region
          %p134 = scmp.lt.s32.totalorder %s12, 1
          %s135 = scalar_select %p134, %s12, 1
          %s136 = smul.addr %s135, 4
          %s137 = smul.addr %s136, 8
          %s138 = scalar_lea.vmem %s1, %s137
        $region28: #{tpu_custom_call.1} parent=23 // pred_fallthru
          _
      $region24: #{tpu_custom_call.1} parent=5 // pred_fallthru
        _
      %p139 = scmp.le.s32.totalorder 1, %s12
      %p140 = scmp.lt.s32.totalorder %s12, 3
      %p141 = pnand %p139, %p140
      %p142 = pneg %p141
      // Predicated region
      $region29: #{tpu_custom_call.1} parent=5 // pred_check
        _
      $region30: #{tpu_custom_call.1} parent=5 // pred_check_branch
        %144 = sbr.rel (%p141) target = $region32
      $region31: #{tpu_custom_call.1} parent=5 // pred_region
        %s145 = ssub.s32 %s12, 1
        %p146 = pneg %p33
        %p147 = pneg %p30
        %p148 = scmp.lt.s32.totalorder %s17, 1
        %s149 = scalar_select %p148, %s17, 1
        %s150 = smul.addr %s149, 4
        %s151 = smul.addr %s150, 8
        %s152 = scalar_lea.vmem %s1, %s151
        %p153 = pneg %p59
        %p154 = pneg %p56
        %p155 = pneg %p80
        %p156 = pneg %p77
        %p157 = pneg %p106
        %p158 = pneg %p103
        %s159 = sand.u32 %s93, 1
        %s160 = scalar_lea.sflag [#allocation3], %s159
        %s161 = sand.u32 %s93, 1
        %s162 = smul.addr %s161, 24
        %s163 = scalar_lea.vmem [#allocation2], %s162
        %p164 = scmp.lt.s32.totalorder %s17, 1
        %s165 = scalar_select %p164, %s17, 1
        %s166 = smul.addr %s165, 4
        %s167 = smul.addr %s166, 8
        %s168 = scalar_lea.vmem %s1, %s167
        %v169 = vld [vmem:[%s0] sm:$0xff]
        %v170 = vld [vmem:[%s168] sm:$0xff]
        %v171 = vld [vmem:[%s168 + $0x8] sm:$0xff]
        %v172 = vld [vmem:[%s168 + $0x10] sm:$0xff]
        %s173 = scalar_lea.vmem %s0, 8
        %v174 = vld [vmem:[%s173] sm:$0xff]
        %v175 = vld [vmem:[%s168] sm:$0xff]
        %v176 = vld [vmem:[%s168 + $0x8] sm:$0xff]
        %v177 = vld [vmem:[%s168 + $0x10] sm:$0xff]
        %v178 = vld [vmem:[%s168 + $0x18] sm:$0xff]
        %183 = vrot.lane.b32.xlu0 %v175, 127
        %v184 = vpop.permute.xlu0 %183
        %185 = vrot.lane.b32.xlu0 %v176, 127
        %v186 = vpop.permute.xlu0 %185
        %187 = vrot.lane.b32.xlu0 %v177, 127
        %v188 = vpop.permute.xlu0 %187
        %189 = vrot.lane.b32.xlu0 %v178, 127
        %v190 = vpop.permute.xlu0 %189
        %vm191 = vcmask 1039360
        %v192 = vsel %vm191, %v184, %v186
        %v193 = vsel %vm191, %v186, %v188
        %v194 = vsel %vm191, %v188, %v190
        %vm198 = vcmask 64512
        %v200 = vsel %vm198, %v174, 0
        %202 = vmatpush.msra.mxu0 0.0
        %203 = vmatpush.msra.mxu0 0.0
        %204 = vmatpush.msra.mxu0 0.0
        %205 = vmatpush.msra.mxu0 0.0
        %206 = vmatpush.msra.mxu0 0.0
        %207 = vmatpush.msra.mxu0 0.0
        %208 = vmatpush.msra.mxu0 0.0
        %209 = vmatpush.msra.mxu0 0.0
        %210 = vmatpush.msra.mxu0 0.0
        %211 = vmatpush.msra.mxu0 0.0
        %212 = vmatpush.msra.mxu0 0.0
        %213 = vmatpush.msra.mxu0 0.0
        %214 = vmatpush.msra.mxu0 0.0
        %215 = vmatpush.msra.mxu0 0.0
        %216 = vmatpush.msra.mxu0 0.0
        %217 = vmatpush.msra.mxu0 %v192
        %218 = vmatmul.f32.gmra.mxu0 %v200
        %v219 = vpop.f32.mrf.mxu0
        %v220 = vadd.f32 0.0, %v219
        %221 = vdwg.mxu0
        %222 = vmatpush.msra.mxu0 0.0
        %223 = vmatpush.msra.mxu0 0.0
        %224 = vmatpush.msra.mxu0 0.0
        %225 = vmatpush.msra.mxu0 0.0
        %226 = vmatpush.msra.mxu0 0.0
        %227 = vmatpush.msra.mxu0 0.0
        %228 = vmatpush.msra.mxu0 0.0
        %229 = vmatpush.msra.mxu0 0.0
        %230 = vmatpush.msra.mxu0 0.0
        %231 = vmatpush.msra.mxu0 0.0
        %232 = vmatpush.msra.mxu0 0.0
        %233 = vmatpush.msra.mxu0 0.0
        %234 = vmatpush.msra.mxu0 0.0
        %235 = vmatpush.msra.mxu0 0.0
        %236 = vmatpush.msra.mxu0 0.0
        %237 = vmatpush.msra.mxu0 %v193
        %238 = vmatmul.f32.gmra.mxu0 %v200
        %v239 = vpop.f32.mrf.mxu0
        %v240 = vadd.f32 0.0, %v239
        %241 = vdwg.mxu0
        %242 = vmatpush.msra.mxu0 0.0
        %243 = vmatpush.msra.mxu0 0.0
        %244 = vmatpush.msra.mxu0 0.0
        %245 = vmatpush.msra.mxu0 0.0
        %246 = vmatpush.msra.mxu0 0.0
        %247 = vmatpush.msra.mxu0 0.0
        %248 = vmatpush.msra.mxu0 0.0
        %249 = vmatpush.msra.mxu0 0.0
        %250 = vmatpush.msra.mxu0 0.0
        %251 = vmatpush.msra.mxu0 0.0
        %252 = vmatpush.msra.mxu0 0.0
        %253 = vmatpush.msra.mxu0 0.0
        %254 = vmatpush.msra.mxu0 0.0
        %255 = vmatpush.msra.mxu0 0.0
        %256 = vmatpush.msra.mxu0 0.0
        %257 = vmatpush.msra.mxu0 %v194
        %258 = vmatmul.f32.gmra.mxu0 %v200
        %v259 = vpop.f32.mrf.mxu0
        %v260 = vadd.f32 0.0, %v259
        %261 = vdwg.mxu0
        %v263 = vsel %vm198, %v169, 0
        %265 = vmatpush.msra.mxu0 0.0
        %266 = vmatpush.msra.mxu0 0.0
        %267 = vmatpush.msra.mxu0 0.0
        %268 = vmatpush.msra.mxu0 0.0
        %269 = vmatpush.msra.mxu0 0.0
        %270 = vmatpush.msra.mxu0 0.0
        %271 = vmatpush.msra.mxu0 0.0
        %272 = vmatpush.msra.mxu0 0.0
        %273 = vmatpush.msra.mxu0 0.0
        %274 = vmatpush.msra.mxu0 0.0
        %275 = vmatpush.msra.mxu0 0.0
        %276 = vmatpush.msra.mxu0 0.0
        %277 = vmatpush.msra.mxu0 0.0
        %278 = vmatpush.msra.mxu0 0.0
        %279 = vmatpush.msra.mxu0 0.0
        %280 = vmatpush.msra.mxu0 %v170
        %281 = vmatmul.f32.gmra.mxu0 %v263
        %v282 = vpop.f32.mrf.mxu0
        %v283 = vadd.f32 %v220, %v282
        %284 = vdwg.mxu0
        %285 = vmatpush.msra.mxu0 0.0
        %286 = vmatpush.msra.mxu0 0.0
        %287 = vmatpush.msra.mxu0 0.0
        %288 = vmatpush.msra.mxu0 0.0
        %289 = vmatpush.msra.mxu0 0.0
        %290 = vmatpush.msra.mxu0 0.0
        %291 = vmatpush.msra.mxu0 0.0
        %292 = vmatpush.msra.mxu0 0.0
        %293 = vmatpush.msra.mxu0 0.0
        %294 = vmatpush.msra.mxu0 0.0
        %295 = vmatpush.msra.mxu0 0.0
        %296 = vmatpush.msra.mxu0 0.0
        %297 = vmatpush.msra.mxu0 0.0
        %298 = vmatpush.msra.mxu0 0.0
        %299 = vmatpush.msra.mxu0 0.0
        %300 = vmatpush.msra.mxu0 %v171
        %301 = vmatmul.f32.gmra.mxu0 %v263
        %v302 = vpop.f32.mrf.mxu0
        %v303 = vadd.f32 %v240, %v302
        %304 = vdwg.mxu0
        %305 = vmatpush.msra.mxu0 0.0
        %306 = vmatpush.msra.mxu0 0.0
        %307 = vmatpush.msra.mxu0 0.0
        %308 = vmatpush.msra.mxu0 0.0
        %309 = vmatpush.msra.mxu0 0.0
        %310 = vmatpush.msra.mxu0 0.0
        %311 = vmatpush.msra.mxu0 0.0
        %312 = vmatpush.msra.mxu0 0.0
        %313 = vmatpush.msra.mxu0 0.0
        %314 = vmatpush.msra.mxu0 0.0
        %315 = vmatpush.msra.mxu0 0.0
        %316 = vmatpush.msra.mxu0 0.0
        %317 = vmatpush.msra.mxu0 0.0
        %318 = vmatpush.msra.mxu0 0.0
        %319 = vmatpush.msra.mxu0 0.0
        %320 = vmatpush.msra.mxu0 %v172
        %321 = vmatmul.f32.gmra.mxu0 %v263
        %v322 = vpop.f32.mrf.mxu0
        %v323 = vadd.f32 %v260, %v322
        %324 = vdwg.mxu0
        %s325 = scalar_lea.vmem %s0, 16
        %v326 = vld [vmem:[%s325] sm:$0xff]
        %327 = vrot.lane.b32.xlu0 %v175, 126
        %v328 = vpop.permute.xlu0 %327
        %329 = vrot.lane.b32.xlu0 %v176, 126
        %v330 = vpop.permute.xlu0 %329
        %331 = vrot.lane.b32.xlu0 %v177, 126
        %v332 = vpop.permute.xlu0 %331
        %333 = vrot.lane.b32.xlu0 %v178, 126
        %v334 = vpop.permute.xlu0 %333
        %vm335 = vcmask 1031168
        %v336 = vsel %vm335, %v328, %v330
        %v337 = vsel %vm335, %v330, %v332
        %v338 = vsel %vm335, %v332, %v334
        %v343 = vsel %vm198, %v326, 0
        %345 = vmatpush.msra.mxu0 0.0
        %346 = vmatpush.msra.mxu0 0.0
        %347 = vmatpush.msra.mxu0 0.0
        %348 = vmatpush.msra.mxu0 0.0
        %349 = vmatpush.msra.mxu0 0.0
        %350 = vmatpush.msra.mxu0 0.0
        %351 = vmatpush.msra.mxu0 0.0
        %352 = vmatpush.msra.mxu0 0.0
        %353 = vmatpush.msra.mxu0 0.0
        %354 = vmatpush.msra.mxu0 0.0
        %355 = vmatpush.msra.mxu0 0.0
        %356 = vmatpush.msra.mxu0 0.0
        %357 = vmatpush.msra.mxu0 0.0
        %358 = vmatpush.msra.mxu0 0.0
        %359 = vmatpush.msra.mxu0 0.0
        %360 = vmatpush.msra.mxu0 %v336
        %361 = vmatmul.f32.gmra.mxu0 %v343
        %v362 = vpop.f32.mrf.mxu0
        %v363 = vadd.f32 0.0, %v362
        %364 = vdwg.mxu0
        %365 = vmatpush.msra.mxu0 0.0
        %366 = vmatpush.msra.mxu0 0.0
        %367 = vmatpush.msra.mxu0 0.0
        %368 = vmatpush.msra.mxu0 0.0
        %369 = vmatpush.msra.mxu0 0.0
        %370 = vmatpush.msra.mxu0 0.0
        %371 = vmatpush.msra.mxu0 0.0
        %372 = vmatpush.msra.mxu0 0.0
        %373 = vmatpush.msra.mxu0 0.0
        %374 = vmatpush.msra.mxu0 0.0
        %375 = vmatpush.msra.mxu0 0.0
        %376 = vmatpush.msra.mxu0 0.0
        %377 = vmatpush.msra.mxu0 0.0
        %378 = vmatpush.msra.mxu0 0.0
        %379 = vmatpush.msra.mxu0 0.0
        %380 = vmatpush.msra.mxu0 %v337
        %381 = vmatmul.f32.gmra.mxu0 %v343
        %v382 = vpop.f32.mrf.mxu0
        %v383 = vadd.f32 0.0, %v382
        %384 = vdwg.mxu0
        %385 = vmatpush.msra.mxu0 0.0
        %386 = vmatpush.msra.mxu0 0.0
        %387 = vmatpush.msra.mxu0 0.0
        %388 = vmatpush.msra.mxu0 0.0
        %389 = vmatpush.msra.mxu0 0.0
        %390 = vmatpush.msra.mxu0 0.0
        %391 = vmatpush.msra.mxu0 0.0
        %392 = vmatpush.msra.mxu0 0.0
        %393 = vmatpush.msra.mxu0 0.0
        %394 = vmatpush.msra.mxu0 0.0
        %395 = vmatpush.msra.mxu0 0.0
        %396 = vmatpush.msra.mxu0 0.0
        %397 = vmatpush.msra.mxu0 0.0
        %398 = vmatpush.msra.mxu0 0.0
        %399 = vmatpush.msra.mxu0 0.0
        %400 = vmatpush.msra.mxu0 %v338
        %401 = vmatmul.f32.gmra.mxu0 %v343
        %v402 = vpop.f32.mrf.mxu0
        %v403 = vadd.f32 0.0, %v402
        %404 = vdwg.mxu0
        %v405 = vadd.f32 %v283, %v363
        %v406 = vadd.f32 %v303, %v383
        %v407 = vadd.f32 %v323, %v403
        %s408 = scalar_lea.vmem %s0, 24
        %v409 = vld [vmem:[%s408] sm:$0xff]
        %410 = vrot.lane.b32.xlu0 %v175, 110
        %v411 = vpop.permute.xlu0 %410
        %412 = vrot.lane.b32.xlu0 %v176, 110
        %v413 = vpop.permute.xlu0 %412
        %414 = vrot.lane.b32.xlu0 %v177, 110
        %v415 = vpop.permute.xlu0 %414
        %416 = vrot.lane.b32.xlu0 %v178, 110
        %v417 = vpop.permute.xlu0 %416
        %vm418 = vcmask 900096
        %v419 = vsel %vm418, %v411, %v413
        %v420 = vsel %vm418, %v413, %v415
        %v421 = vsel %vm418, %v415, %v417
        %v426 = vsel %vm198, %v409, 0
        %428 = vmatpush.msra.mxu0 0.0
        %429 = vmatpush.msra.mxu0 0.0
        %430 = vmatpush.msra.mxu0 0.0
        %431 = vmatpush.msra.mxu0 0.0
        %432 = vmatpush.msra.mxu0 0.0
        %433 = vmatpush.msra.mxu0 0.0
        %434 = vmatpush.msra.mxu0 0.0
        %435 = vmatpush.msra.mxu0 0.0
        %436 = vmatpush.msra.mxu0 0.0
        %437 = vmatpush.msra.mxu0 0.0
        %438 = vmatpush.msra.mxu0 0.0
        %439 = vmatpush.msra.mxu0 0.0
        %440 = vmatpush.msra.mxu0 0.0
        %441 = vmatpush.msra.mxu0 0.0
        %442 = vmatpush.msra.mxu0 0.0
        %443 = vmatpush.msra.mxu0 %v419
        %444 = vmatmul.f32.gmra.mxu0 %v426
        %v445 = vpop.f32.mrf.mxu0
        %v446 = vadd.f32 0.0, %v445
        %447 = vdwg.mxu0
        %448 = vmatpush.msra.mxu0 0.0
        %449 = vmatpush.msra.mxu0 0.0
        %450 = vmatpush.msra.mxu0 0.0
        %451 = vmatpush.msra.mxu0 0.0
        %452 = vmatpush.msra.mxu0 0.0
        %453 = vmatpush.msra.mxu0 0.0
        %454 = vmatpush.msra.mxu0 0.0
        %455 = vmatpush.msra.mxu0 0.0
        %456 = vmatpush.msra.mxu0 0.0
        %457 = vmatpush.msra.mxu0 0.0
        %458 = vmatpush.msra.mxu0 0.0
        %459 = vmatpush.msra.mxu0 0.0
        %460 = vmatpush.msra.mxu0 0.0
        %461 = vmatpush.msra.mxu0 0.0
        %462 = vmatpush.msra.mxu0 0.0
        %463 = vmatpush.msra.mxu0 %v420
        %464 = vmatmul.f32.gmra.mxu0 %v426
        %v465 = vpop.f32.mrf.mxu0
        %v466 = vadd.f32 0.0, %v465
        %467 = vdwg.mxu0
        %468 = vmatpush.msra.mxu0 0.0
        %469 = vmatpush.msra.mxu0 0.0
        %470 = vmatpush.msra.mxu0 0.0
        %471 = vmatpush.msra.mxu0 0.0
        %472 = vmatpush.msra.mxu0 0.0
        %473 = vmatpush.msra.mxu0 0.0
        %474 = vmatpush.msra.mxu0 0.0
        %475 = vmatpush.msra.mxu0 0.0
        %476 = vmatpush.msra.mxu0 0.0
        %477 = vmatpush.msra.mxu0 0.0
        %478 = vmatpush.msra.mxu0 0.0
        %479 = vmatpush.msra.mxu0 0.0
        %480 = vmatpush.msra.mxu0 0.0
        %481 = vmatpush.msra.mxu0 0.0
        %482 = vmatpush.msra.mxu0 0.0
        %483 = vmatpush.msra.mxu0 %v421
        %484 = vmatmul.f32.gmra.mxu0 %v426
        %v485 = vpop.f32.mrf.mxu0
        %v486 = vadd.f32 0.0, %v485
        %487 = vdwg.mxu0
        %v488 = vadd.f32 %v405, %v446
        %v489 = vadd.f32 %v406, %v466
        %v490 = vadd.f32 %v407, %v486
        %s491 = scalar_lea.vmem %s0, 32
        %v492 = vld [vmem:[%s491] sm:$0xff]
        %493 = vrot.lane.b32.xlu0 %v175, 109
        %v494 = vpop.permute.xlu0 %493
        %495 = vrot.lane.b32.xlu0 %v176, 109
        %v496 = vpop.permute.xlu0 %495
        %497 = vrot.lane.b32.xlu0 %v177, 109
        %v498 = vpop.permute.xlu0 %497
        %499 = vrot.lane.b32.xlu0 %v178, 109
        %v500 = vpop.permute.xlu0 %499
        %vm501 = vcmask 891904
        %v502 = vsel %vm501, %v494, %v496
        %v503 = vsel %vm501, %v496, %v498
        %v504 = vsel %vm501, %v498, %v500
        %v509 = vsel %vm198, %v492, 0
        %511 = vmatpush.msra.mxu0 0.0
        %512 = vmatpush.msra.mxu0 0.0
        %513 = vmatpush.msra.mxu0 0.0
        %514 = vmatpush.msra.mxu0 0.0
        %515 = vmatpush.msra.mxu0 0.0
        %516 = vmatpush.msra.mxu0 0.0
        %517 = vmatpush.msra.mxu0 0.0
        %518 = vmatpush.msra.mxu0 0.0
        %519 = vmatpush.msra.mxu0 0.0
        %520 = vmatpush.msra.mxu0 0.0
        %521 = vmatpush.msra.mxu0 0.0
        %522 = vmatpush.msra.mxu0 0.0
        %523 = vmatpush.msra.mxu0 0.0
        %524 = vmatpush.msra.mxu0 0.0
        %525 = vmatpush.msra.mxu0 0.0
        %526 = vmatpush.msra.mxu0 %v502
        %527 = vmatmul.f32.gmra.mxu0 %v509
        %v528 = vpop.f32.mrf.mxu0
        %v529 = vadd.f32 0.0, %v528
        %530 = vdwg.mxu0
        %531 = vmatpush.msra.mxu0 0.0
        %532 = vmatpush.msra.mxu0 0.0
        %533 = vmatpush.msra.mxu0 0.0
        %534 = vmatpush.msra.mxu0 0.0
        %535 = vmatpush.msra.mxu0 0.0
        %536 = vmatpush.msra.mxu0 0.0
        %537 = vmatpush.msra.mxu0 0.0
        %538 = vmatpush.msra.mxu0 0.0
        %539 = vmatpush.msra.mxu0 0.0
        %540 = vmatpush.msra.mxu0 0.0
        %541 = vmatpush.msra.mxu0 0.0
        %542 = vmatpush.msra.mxu0 0.0
        %543 = vmatpush.msra.mxu0 0.0
        %544 = vmatpush.msra.mxu0 0.0
        %545 = vmatpush.msra.mxu0 0.0
        %546 = vmatpush.msra.mxu0 %v503
        %547 = vmatmul.f32.gmra.mxu0 %v509
        %v548 = vpop.f32.mrf.mxu0
        %v549 = vadd.f32 0.0, %v548
        %550 = vdwg.mxu0
        %551 = vmatpush.msra.mxu0 0.0
        %552 = vmatpush.msra.mxu0 0.0
        %553 = vmatpush.msra.mxu0 0.0
        %554 = vmatpush.msra.mxu0 0.0
        %555 = vmatpush.msra.mxu0 0.0
        %556 = vmatpush.msra.mxu0 0.0
        %557 = vmatpush.msra.mxu0 0.0
        %558 = vmatpush.msra.mxu0 0.0
        %559 = vmatpush.msra.mxu0 0.0
        %560 = vmatpush.msra.mxu0 0.0
        %561 = vmatpush.msra.mxu0 0.0
        %562 = vmatpush.msra.mxu0 0.0
        %563 = vmatpush.msra.mxu0 0.0
        %564 = vmatpush.msra.mxu0 0.0
        %565 = vmatpush.msra.mxu0 0.0
        %566 = vmatpush.msra.mxu0 %v504
        %567 = vmatmul.f32.gmra.mxu0 %v509
        %v568 = vpop.f32.mrf.mxu0
        %v569 = vadd.f32 0.0, %v568
        %570 = vdwg.mxu0
        %v571 = vadd.f32 %v488, %v529
        %v572 = vadd.f32 %v489, %v549
        %v573 = vadd.f32 %v490, %v569
        %s574 = scalar_lea.vmem %s0, 40
        %v575 = vld [vmem:[%s574] sm:$0xff]
        %576 = vrot.lane.b32.xlu0 %v175, 108
        %v577 = vpop.permute.xlu0 %576
        %578 = vrot.lane.b32.xlu0 %v176, 108
        %v579 = vpop.permute.xlu0 %578
        %580 = vrot.lane.b32.xlu0 %v177, 108
        %v581 = vpop.permute.xlu0 %580
        %582 = vrot.lane.b32.xlu0 %v178, 108
        %v583 = vpop.permute.xlu0 %582
        %vm584 = vcmask 883712
        %v585 = vsel %vm584, %v577, %v579
        %v586 = vsel %vm584, %v579, %v581
        %v587 = vsel %vm584, %v581, %v583
        %v592 = vsel %vm198, %v575, 0
        %594 = vmatpush.msra.mxu0 0.0
        %595 = vmatpush.msra.mxu0 0.0
        %596 = vmatpush.msra.mxu0 0.0
        %597 = vmatpush.msra.mxu0 0.0
        %598 = vmatpush.msra.mxu0 0.0
        %599 = vmatpush.msra.mxu0 0.0
        %600 = vmatpush.msra.mxu0 0.0
        %601 = vmatpush.msra.mxu0 0.0
        %602 = vmatpush.msra.mxu0 0.0
        %603 = vmatpush.msra.mxu0 0.0
        %604 = vmatpush.msra.mxu0 0.0
        %605 = vmatpush.msra.mxu0 0.0
        %606 = vmatpush.msra.mxu0 0.0
        %607 = vmatpush.msra.mxu0 0.0
        %608 = vmatpush.msra.mxu0 0.0
        %609 = vmatpush.msra.mxu0 %v585
        %610 = vmatmul.f32.gmra.mxu0 %v592
        %v611 = vpop.f32.mrf.mxu0
        %v612 = vadd.f32 0.0, %v611
        %613 = vdwg.mxu0
        %614 = vmatpush.msra.mxu0 0.0
        %615 = vmatpush.msra.mxu0 0.0
        %616 = vmatpush.msra.mxu0 0.0
        %617 = vmatpush.msra.mxu0 0.0
        %618 = vmatpush.msra.mxu0 0.0
        %619 = vmatpush.msra.mxu0 0.0
        %620 = vmatpush.msra.mxu0 0.0
        %621 = vmatpush.msra.mxu0 0.0
        %622 = vmatpush.msra.mxu0 0.0
        %623 = vmatpush.msra.mxu0 0.0
        %624 = vmatpush.msra.mxu0 0.0
        %625 = vmatpush.msra.mxu0 0.0
        %626 = vmatpush.msra.mxu0 0.0
        %627 = vmatpush.msra.mxu0 0.0
        %628 = vmatpush.msra.mxu0 0.0
        %629 = vmatpush.msra.mxu0 %v586
        %630 = vmatmul.f32.gmra.mxu0 %v592
        %v631 = vpop.f32.mrf.mxu0
        %v632 = vadd.f32 0.0, %v631
        %633 = vdwg.mxu0
        %634 = vmatpush.msra.mxu0 0.0
        %635 = vmatpush.msra.mxu0 0.0
        %636 = vmatpush.msra.mxu0 0.0
        %637 = vmatpush.msra.mxu0 0.0
        %638 = vmatpush.msra.mxu0 0.0
        %639 = vmatpush.msra.mxu0 0.0
        %640 = vmatpush.msra.mxu0 0.0
        %641 = vmatpush.msra.mxu0 0.0
        %642 = vmatpush.msra.mxu0 0.0
        %643 = vmatpush.msra.mxu0 0.0
        %644 = vmatpush.msra.mxu0 0.0
        %645 = vmatpush.msra.mxu0 0.0
        %646 = vmatpush.msra.mxu0 0.0
        %647 = vmatpush.msra.mxu0 0.0
        %648 = vmatpush.msra.mxu0 0.0
        %649 = vmatpush.msra.mxu0 %v587
        %650 = vmatmul.f32.gmra.mxu0 %v592
        %v651 = vpop.f32.mrf.mxu0
        %v652 = vadd.f32 0.0, %v651
        %653 = vdwg.mxu0
        %v654 = vadd.f32 %v571, %v612
        %v655 = vadd.f32 %v572, %v632
        %v656 = vadd.f32 %v573, %v652
        %s657 = scalar_lea.vmem %s0, 48
        %v658 = vld [vmem:[%s657] sm:$0xff]
        %659 = vrot.lane.b32.xlu0 %v175, 92
        %v660 = vpop.permute.xlu0 %659
        %661 = vrot.lane.b32.xlu0 %v176, 92
        %v662 = vpop.permute.xlu0 %661
        %663 = vrot.lane.b32.xlu0 %v177, 92
        %v664 = vpop.permute.xlu0 %663
        %665 = vrot.lane.b32.xlu0 %v178, 92
        %v666 = vpop.permute.xlu0 %665
        %vm667 = vcmask 752640
        %v668 = vsel %vm667, %v660, %v662
        %v669 = vsel %vm667, %v662, %v664
        %v670 = vsel %vm667, %v664, %v666
        %v675 = vsel %vm198, %v658, 0
        %677 = vmatpush.msra.mxu0 0.0
        %678 = vmatpush.msra.mxu0 0.0
        %679 = vmatpush.msra.mxu0 0.0
        %680 = vmatpush.msra.mxu0 0.0
        %681 = vmatpush.msra.mxu0 0.0
        %682 = vmatpush.msra.mxu0 0.0
        %683 = vmatpush.msra.mxu0 0.0
        %684 = vmatpush.msra.mxu0 0.0
        %685 = vmatpush.msra.mxu0 0.0
        %686 = vmatpush.msra.mxu0 0.0
        %687 = vmatpush.msra.mxu0 0.0
        %688 = vmatpush.msra.mxu0 0.0
        %689 = vmatpush.msra.mxu0 0.0
        %690 = vmatpush.msra.mxu0 0.0
        %691 = vmatpush.msra.mxu0 0.0
        %692 = vmatpush.msra.mxu0 %v668
        %693 = vmatmul.f32.gmra.mxu0 %v675
        %v694 = vpop.f32.mrf.mxu0
        %v695 = vadd.f32 0.0, %v694
        %696 = vdwg.mxu0
        %697 = vmatpush.msra.mxu0 0.0
        %698 = vmatpush.msra.mxu0 0.0
        %699 = vmatpush.msra.mxu0 0.0
        %700 = vmatpush.msra.mxu0 0.0
        %701 = vmatpush.msra.mxu0 0.0
        %702 = vmatpush.msra.mxu0 0.0
        %703 = vmatpush.msra.mxu0 0.0
        %704 = vmatpush.msra.mxu0 0.0
        %705 = vmatpush.msra.mxu0 0.0
        %706 = vmatpush.msra.mxu0 0.0
        %707 = vmatpush.msra.mxu0 0.0
        %708 = vmatpush.msra.mxu0 0.0
        %709 = vmatpush.msra.mxu0 0.0
        %710 = vmatpush.msra.mxu0 0.0
        %711 = vmatpush.msra.mxu0 0.0
        %712 = vmatpush.msra.mxu0 %v669
        %713 = vmatmul.f32.gmra.mxu0 %v675
        %v714 = vpop.f32.mrf.mxu0
        %v715 = vadd.f32 0.0, %v714
        %716 = vdwg.mxu0
        %717 = vmatpush.msra.mxu0 0.0
        %718 = vmatpush.msra.mxu0 0.0
        %719 = vmatpush.msra.mxu0 0.0
        %720 = vmatpush.msra.mxu0 0.0
        %721 = vmatpush.msra.mxu0 0.0
        %722 = vmatpush.msra.mxu0 0.0
        %723 = vmatpush.msra.mxu0 0.0
        %724 = vmatpush.msra.mxu0 0.0
        %725 = vmatpush.msra.mxu0 0.0
        %726 = vmatpush.msra.mxu0 0.0
        %727 = vmatpush.msra.mxu0 0.0
        %728 = vmatpush.msra.mxu0 0.0
        %729 = vmatpush.msra.mxu0 0.0
        %730 = vmatpush.msra.mxu0 0.0
        %731 = vmatpush.msra.mxu0 0.0
        %732 = vmatpush.msra.mxu0 %v670
        %733 = vmatmul.f32.gmra.mxu0 %v675
        %v734 = vpop.f32.mrf.mxu0
        %v735 = vadd.f32 0.0, %v734
        %736 = vdwg.mxu0
        %v737 = vadd.f32 %v654, %v695
        %v738 = vadd.f32 %v655, %v715
        %v739 = vadd.f32 %v656, %v735
        %s740 = scalar_lea.vmem %s0, 56
        %v741 = vld [vmem:[%s740] sm:$0xff]
        %742 = vrot.lane.b32.xlu0 %v175, 91
        %v743 = vpop.permute.xlu0 %742
        %744 = vrot.lane.b32.xlu0 %v176, 91
        %v745 = vpop.permute.xlu0 %744
        %746 = vrot.lane.b32.xlu0 %v177, 91
        %v747 = vpop.permute.xlu0 %746
        %748 = vrot.lane.b32.xlu0 %v178, 91
        %v749 = vpop.permute.xlu0 %748
        %vm750 = vcmask 744448
        %v751 = vsel %vm750, %v743, %v745
        %v752 = vsel %vm750, %v745, %v747
        %v753 = vsel %vm750, %v747, %v749
        %v758 = vsel %vm198, %v741, 0
        %760 = vmatpush.msra.mxu0 0.0
        %761 = vmatpush.msra.mxu0 0.0
        %762 = vmatpush.msra.mxu0 0.0
        %763 = vmatpush.msra.mxu0 0.0
        %764 = vmatpush.msra.mxu0 0.0
        %765 = vmatpush.msra.mxu0 0.0
        %766 = vmatpush.msra.mxu0 0.0
        %767 = vmatpush.msra.mxu0 0.0
        %768 = vmatpush.msra.mxu0 0.0
        %769 = vmatpush.msra.mxu0 0.0
        %770 = vmatpush.msra.mxu0 0.0
        %771 = vmatpush.msra.mxu0 0.0
        %772 = vmatpush.msra.mxu0 0.0
        %773 = vmatpush.msra.mxu0 0.0
        %774 = vmatpush.msra.mxu0 0.0
        %775 = vmatpush.msra.mxu0 %v751
        %776 = vmatmul.f32.gmra.mxu0 %v758
        %v777 = vpop.f32.mrf.mxu0
        %v778 = vadd.f32 0.0, %v777
        %779 = vdwg.mxu0
        %780 = vmatpush.msra.mxu0 0.0
        %781 = vmatpush.msra.mxu0 0.0
        %782 = vmatpush.msra.mxu0 0.0
        %783 = vmatpush.msra.mxu0 0.0
        %784 = vmatpush.msra.mxu0 0.0
        %785 = vmatpush.msra.mxu0 0.0
        %786 = vmatpush.msra.mxu0 0.0
        %787 = vmatpush.msra.mxu0 0.0
        %788 = vmatpush.msra.mxu0 0.0
        %789 = vmatpush.msra.mxu0 0.0
        %790 = vmatpush.msra.mxu0 0.0
        %791 = vmatpush.msra.mxu0 0.0
        %792 = vmatpush.msra.mxu0 0.0
        %793 = vmatpush.msra.mxu0 0.0
        %794 = vmatpush.msra.mxu0 0.0
        %795 = vmatpush.msra.mxu0 %v752
        %796 = vmatmul.f32.gmra.mxu0 %v758
        %v797 = vpop.f32.mrf.mxu0
        %v798 = vadd.f32 0.0, %v797
        %799 = vdwg.mxu0
        %800 = vmatpush.msra.mxu0 0.0
        %801 = vmatpush.msra.mxu0 0.0
        %802 = vmatpush.msra.mxu0 0.0
        %803 = vmatpush.msra.mxu0 0.0
        %804 = vmatpush.msra.mxu0 0.0
        %805 = vmatpush.msra.mxu0 0.0
        %806 = vmatpush.msra.mxu0 0.0
        %807 = vmatpush.msra.mxu0 0.0
        %808 = vmatpush.msra.mxu0 0.0
        %809 = vmatpush.msra.mxu0 0.0
        %810 = vmatpush.msra.mxu0 0.0
        %811 = vmatpush.msra.mxu0 0.0
        %812 = vmatpush.msra.mxu0 0.0
        %813 = vmatpush.msra.mxu0 0.0
        %814 = vmatpush.msra.mxu0 0.0
        %815 = vmatpush.msra.mxu0 %v753
        %816 = vmatmul.f32.gmra.mxu0 %v758
        %v817 = vpop.f32.mrf.mxu0
        %v818 = vadd.f32 0.0, %v817
        %819 = vdwg.mxu0
        %v820 = vadd.f32 %v737, %v778
        %v821 = vadd.f32 %v738, %v798
        %v822 = vadd.f32 %v739, %v818
        %s823 = scalar_lea.vmem %s0, 64
        %v824 = vld [vmem:[%s823] sm:$0xff]
        %825 = vrot.lane.b32.xlu0 %v175, 90
        %v826 = vpop.permute.xlu0 %825
        %827 = vrot.lane.b32.xlu0 %v176, 90
        %v828 = vpop.permute.xlu0 %827
        %829 = vrot.lane.b32.xlu0 %v177, 90
        %v830 = vpop.permute.xlu0 %829
        %831 = vrot.lane.b32.xlu0 %v178, 90
        %v832 = vpop.permute.xlu0 %831
        %vm833 = vcmask 736256
        %v834 = vsel %vm833, %v826, %v828
        %v835 = vsel %vm833, %v828, %v830
        %v836 = vsel %vm833, %v830, %v832
        %v841 = vsel %vm198, %v824, 0
        %843 = vmatpush.msra.mxu0 0.0
        %844 = vmatpush.msra.mxu0 0.0
        %845 = vmatpush.msra.mxu0 0.0
        %846 = vmatpush.msra.mxu0 0.0
        %847 = vmatpush.msra.mxu0 0.0
        %848 = vmatpush.msra.mxu0 0.0
        %849 = vmatpush.msra.mxu0 0.0
        %850 = vmatpush.msra.mxu0 0.0
        %851 = vmatpush.msra.mxu0 0.0
        %852 = vmatpush.msra.mxu0 0.0
        %853 = vmatpush.msra.mxu0 0.0
        %854 = vmatpush.msra.mxu0 0.0
        %855 = vmatpush.msra.mxu0 0.0
        %856 = vmatpush.msra.mxu0 0.0
        %857 = vmatpush.msra.mxu0 0.0
        %858 = vmatpush.msra.mxu0 %v834
        %859 = vmatmul.f32.gmra.mxu0 %v841
        %v860 = vpop.f32.mrf.mxu0
        %v861 = vadd.f32 0.0, %v860
        %862 = vdwg.mxu0
        %863 = vmatpush.msra.mxu0 0.0
        %864 = vmatpush.msra.mxu0 0.0
        %865 = vmatpush.msra.mxu0 0.0
        %866 = vmatpush.msra.mxu0 0.0
        %867 = vmatpush.msra.mxu0 0.0
        %868 = vmatpush.msra.mxu0 0.0
        %869 = vmatpush.msra.mxu0 0.0
        %870 = vmatpush.msra.mxu0 0.0
        %871 = vmatpush.msra.mxu0 0.0
        %872 = vmatpush.msra.mxu0 0.0
        %873 = vmatpush.msra.mxu0 0.0
        %874 = vmatpush.msra.mxu0 0.0
        %875 = vmatpush.msra.mxu0 0.0
        %876 = vmatpush.msra.mxu0 0.0
        %877 = vmatpush.msra.mxu0 0.0
        %878 = vmatpush.msra.mxu0 %v835
        %879 = vmatmul.f32.gmra.mxu0 %v841
        %v880 = vpop.f32.mrf.mxu0
        %v881 = vadd.f32 0.0, %v880
        %882 = vdwg.mxu0
        %883 = vmatpush.msra.mxu0 0.0
        %884 = vmatpush.msra.mxu0 0.0
        %885 = vmatpush.msra.mxu0 0.0
        %886 = vmatpush.msra.mxu0 0.0
        %887 = vmatpush.msra.mxu0 0.0
        %888 = vmatpush.msra.mxu0 0.0
        %889 = vmatpush.msra.mxu0 0.0
        %890 = vmatpush.msra.mxu0 0.0
        %891 = vmatpush.msra.mxu0 0.0
        %892 = vmatpush.msra.mxu0 0.0
        %893 = vmatpush.msra.mxu0 0.0
        %894 = vmatpush.msra.mxu0 0.0
        %895 = vmatpush.msra.mxu0 0.0
        %896 = vmatpush.msra.mxu0 0.0
        %897 = vmatpush.msra.mxu0 0.0
        %898 = vmatpush.msra.mxu0 %v836
        %899 = vmatmul.f32.gmra.mxu0 %v841
        %v900 = vpop.f32.mrf.mxu0
        %v901 = vadd.f32 0.0, %v900
        %902 = vdwg.mxu0
        %v903 = vadd.f32 %v820, %v861
        %v904 = vadd.f32 %v821, %v881
        %v905 = vadd.f32 %v822, %v901
        %v906 = vld [vmem:[%s2] sm:$0xff]
        %908 = vset.pattern.permute.xlu0 0
        %909 = vperm.xlu0 %908, %v906
        %v910 = vpop.permute.xlu0 %909
        %v912 = vadd.f32 %v903, %v910
        %v913 = vadd.f32 %v904, %v910
        %v914 = vadd.f32 %v905, %v910
        %v915 = vmul.f32 %v912, 0.01
        %v916 = vmul.f32 %v913, 0.01
        %v917 = vmul.f32 %v914, 0.01
        %v918 = vmax.f32 %v912, %v915
        %v919 = vmax.f32 %v913, %v916
        %v920 = vmax.f32 %v914, %v917
        %921 = vst [vmem:[%s163] sm:$0xff] %v918
        %922 = vst [vmem:[%s163 + $0x8] sm:$0xff] %v919
        %923 = vst [vmem:[%s163 + $0x10] sm:$0xff] %v920
        %s924 = sand.u32 %s93, 1
        %s925 = scalar_lea.sflag [#allocation3], %s924
        %s926 = sand.u32 %s93, 1
        %s927 = smul.addr %s926, 24
        %s928 = scalar_lea.vmem [#allocation2], %s927
        // Predicated region
        $region33: #{tpu_custom_call.1} parent=31 // pred_check
          %p929 = pneg %p103
        $region34: #{tpu_custom_call.1} parent=31 // pred_check_branch
          %931 = sbr.rel (%p929) target = $region36
        $region35: #{tpu_custom_call.1} parent=31 // pred_region
          %933 = vsyncadd %s925, 0
          %s934 = smul.addr %s17, 3
          %s935 = smul.addr %s934, 8
          %s936 = scalar_lea.hbm %s3, %s935
          %s938 = sshll.u32 %s928, 4
          %s939 = int_to_ptr.vmem [resolvable:$true] %s938
          %s940 = sshll.u32 %s936, 4
          %s941 = int_to_ptr.hbm [resolvable:$true] %s940
          %943 = dma.vmem_to_hbm [thread:$0]  %s939, 384, %s941, %s925
        $region36: #{tpu_custom_call.1} parent=31 // pred_fallthru
          _
      $region32: #{tpu_custom_call.1} parent=5 // pred_fallthru
        _
      %p944 = scmp.le.s32.totalorder 2, %s12
      // Predicated region
      $region37: #{tpu_custom_call.1} parent=5 // pred_check
        %p945 = pneg %p944
      $region38: #{tpu_custom_call.1} parent=5 // pred_check_branch
        %947 = sbr.rel (%p945) target = $region40
      $region39: #{tpu_custom_call.1} parent=5 // pred_region
        %s948 = ssub.s32 %s12, 2
        // Predicated region
        $region41: #{tpu_custom_call.1} parent=39 // pred_check
          %p949 = pneg %p109
        $region42: #{tpu_custom_call.1} parent=39 // pred_check_branch
          %951 = sbr.rel (%p949) target = $region44
        $region43: #{tpu_custom_call.1} parent=39 // pred_region
          %s952 = sand.u32 %s94, 1
          %s953 = scalar_lea.sflag [#allocation3], %s952
          %s954 = sand.u32 %s94, 1
          %s955 = smul.addr %s954, 24
          %s956 = scalar_lea.vmem [#allocation2], %s955
          %958 = dma.done %s953, 384
        $region44: #{tpu_custom_call.1} parent=39 // pred_fallthru
          _
      $region40: #{tpu_custom_call.1} parent=5 // pred_fallthru
        _
    $region6: #{tpu_custom_call.1} parent=1 // loop_footer
      %s16 = sadd.s32 1, %s12
    $region7: #{tpu_custom_call.1} parent=1 // loop_footer_branch
      %11 = sbr.rel target = $region3
    $region8: #{tpu_custom_call.1} parent=1 // loop_exit
      _
    %959 = vsyncpa [#allocation3], 1
    %s960 = scalar_lea.sflag [#allocation3], 1
    %961 = vsyncpa %s960, 1

</llo_original>
